<compile_context>
chip_gen: v5e
topology: v5e:2x2
jax: 0.10.0
libtpu: 0.0.40
codegen_flags: <defaults>
</compile_context>

<pallas_src>
import jax
import jax.numpy as jnp
from jax.experimental import pallas as pl
from jax.experimental.pallas import tpu as pltpu

_MIB = 1024 * 1024


def _round_up(x, m):
    return ((x + m - 1) // m) * m


def _vmem_budget_bytes():
    """Generation-aware working-set budget (leaves headroom below capacity)."""
    cap = None
    try:
        info = pltpu.get_tpu_info()
        cap = getattr(info, "vmem_capacity_bytes", None)
    except Exception:
        cap = None
    if cap is None:
        cap = 64 * _MIB            # unknown -> assume the small (v7x-like) VMEM
    if cap >= 128 * _MIB:          # v5e / v6e: 128 MiB physical VMEM
        return 96 * _MIB
    return 48 * _MIB               # v7x: 64 MiB per TensorCore


def _padded_nodes(n):
    """Pad node count to 128; prefer 512/256 alignment when the extra
    adjacency padding stays under ~12.5%, so large tiles divide cleanly."""
    n128 = _round_up(n, 128)
    for g in (512, 256):
        ng = _round_up(n, g)
        if ng <= int(n128 * 1.125):
            return ng
    return n128


def _select_tiles(n_pad, budget, bytes_fn):
    """Largest (tm, tk) dividing n_pad whose pipelined working set fits the
    budget.  tm (row tile) is prioritized: it controls RHS re-reads."""
    cands = [c for c in (1024, 512, 256, 128) if c <= n_pad and n_pad % c == 0]
    if not cands:
        cands = [n_pad]
    for tm in cands:
        for tk in cands:
            if bytes_fn(tm, tk) <= budget:
                return tm, tk
    return cands[-1], cands[-1]


def _gcn_propagate_kernel(adj_ref, fts_ref, b_ref, out_ref, acc_ref):
    """out = ReLU(adj @ fts + bias); fts already projected; node dim tiled."""
    k = pl.program_id(2)

    @pl.when(k == 0)
    def _init():
        acc_ref[...] = jnp.zeros_like(acc_ref)

    acc_ref[...] += jnp.dot(adj_ref[...], fts_ref[...],
                            preferred_element_type=jnp.float32)

    @pl.when(k == pl.num_programs(2) - 1)
    def _finalize():
        out = jnp.maximum(acc_ref[...] + b_ref[...], 0.0)
        out_ref[...] = out.astype(out_ref.dtype)


def _gcn_propagate_project_kernel(adj_ref, seq_ref, w_ref, b_ref, out_ref, acc_ref):
    """acc = adj @ seq (tiled over node dim); epilogue: ReLU(acc @ W + bias)."""
    k = pl.program_id(2)

    @pl.when(k == 0)
    def _init():
        acc_ref[...] = jnp.zeros_like(acc_ref)

    acc_ref[...] += jnp.dot(adj_ref[...], seq_ref[...],
                            preferred_element_type=jnp.float32)

    @pl.when(k == pl.num_programs(2) - 1)
    def _finalize():
        # Keep the f32 accumulator as the matmul LHS (no down-cast).
        proj = jnp.dot(acc_ref[...], w_ref[...].astype(jnp.float32),
                       preferred_element_type=jnp.float32)
        out = jnp.maximum(proj + b_ref[...], 0.0)
        out_ref[...] = out.astype(out_ref.dtype)


def gcn_forward(seq, adj, weight, bias, *, compute_dtype=jnp.bfloat16):
    """
    seq:    (B, N, in_ft)   float32
    adj:    (B, N, N)       float32 (dense adjacency)
    weight: (out_ft, in_ft) float32 (PyTorch nn.Linear layout)
    bias:   (out_ft,)       float32
    returns (B, N, out_ft)  float32
    """
    B, N, in_ft = seq.shape
    out_ft = weight.shape[0]
    out_dtype = seq.dtype

    cd_size = jnp.dtype(compute_dtype).itemsize
    out_size = jnp.dtype(out_dtype).itemsize

    n_pad = _padded_nodes(N)
    in_p = _round_up(in_ft, 128)
    out_p = _round_up(out_ft, 128)
    budget = _vmem_budget_bytes()

    # Bias (f32 epilogue operand), lane-padded.
    bias_p = bias.astype(jnp.float32)
    if out_p != out_ft:
        bias_p = jnp.pad(bias_p, (0, out_p - out_ft))
    bias_p = bias_p.reshape(1, out_p)

    # Cast BEFORE padding so the padded copy of the biggest tensor (B*n_pad^2
    # adjacency) is compute_dtype-sized; elide the pad for aligned N.
    adj_p = adj if adj.dtype == compute_dtype else adj.astype(compute_dtype)
    if n_pad != N:
        adj_p = jnp.pad(adj_p, ((0, 0), (0, n_pad - N), (0, n_pad - N)))

    # Association: propagate-first fuses the small projection into the
    # epilogue when in_ft < out_ft, unless the double-buffered (in_p, out_p)
    # weight block would eat too much of the VMEM budget.
    propagate_first = in_ft < out_ft
    if propagate_first and 2 * in_p * out_p * cd_size > budget // 2:
        propagate_first = False

    adj_spec = lambda tm, tk: pl.BlockSpec((pl.Squeezed(), tm, tk),
                                           lambda b, i, k: (b, i, k))
    bias_spec = pl.BlockSpec((1, out_p), lambda b, i, k: (0, 0))
    out_spec = lambda tm: pl.BlockSpec((pl.Squeezed(), tm, out_p),
                                       lambda b, i, k: (b, i, 0))
    out_shape = jax.ShapeDtypeStruct((B, n_pad, out_p), out_dtype)

    if propagate_first:
        seq_p = seq if seq.dtype == compute_dtype else seq.astype(compute_dtype)
        if n_pad != N or in_p != in_ft:
            seq_p = jnp.pad(seq_p, ((0, 0), (0, n_pad - N), (0, in_p - in_ft)))
        w_p = weight.T.astype(compute_dtype)
        if in_p != in_ft or out_p != out_ft:
            w_p = jnp.pad(w_p, ((0, in_p - in_ft), (0, out_p - out_ft)))

        def bytes_a(tm, tk):
            return (2 * tm * tk * cd_size            # adj block (double-buffered)
                    + 2 * tk * in_p * cd_size        # seq block
                    + 2 * in_p * out_p * cd_size     # weight block (constant map)
                    + 2 * tm * out_p * out_size      # output block
                    + tm * in_p * 4                  # f32 accumulator scratch
                    + 2 * out_p * 4)                 # bias

        tm, tk = _select_tiles(n_pad, budget, bytes_a)
        vmem_limit = max(budget, bytes_a(tm, tk) + 8 * _MIB)
        grid = (B, n_pad // tm, n_pad // tk)

        out = pl.pallas_call(
            _gcn_propagate_project_kernel,
            out_shape=out_shape,
            grid_spec=pltpu.PrefetchScalarGridSpec(
                num_scalar_prefetch=0,
                grid=grid,
                in_specs=[
                    adj_spec(tm, tk),
                    pl.BlockSpec((pl.Squeezed(), tk, in_p), lambda b, i, k: (b, k, 0)),
                    pl.BlockSpec((in_p, out_p), lambda b, i, k: (0, 0)),
                    bias_spec,
                ],
                out_specs=out_spec(tm),
                scratch_shapes=[pltpu.VMEM((tm, in_p), jnp.float32)],
            ),
            compiler_params=pltpu.CompilerParams(
                dimension_semantics=("parallel", "parallel", "arbitrary"),
                vmem_limit_bytes=vmem_limit,
            ),
        )(adj_p, seq_p, w_p, bias_p)
    else:
        # Project first: one XLA GEMM over (B*N, in_ft) rows, emitted directly
        # in compute_dtype (only one compute_dtype-sized fts buffer is
        # materialized), then the kernel does tiled adj @ fts + bias + ReLU.
        fts = jnp.matmul(
            seq.reshape(B * N, in_ft).astype(compute_dtype),
            weight.T.astype(compute_dtype),
            preferred_element_type=compute_dtype,
        ).reshape(B, N, out_ft)
        if n_pad != N or out_p != out_ft:
            fts = jnp.pad(fts, ((0, 0), (0, n_pad - N), (0, out_p - out_ft)))

        def bytes_b(tm, tk):
            return (2 * tm * tk * cd_size            # adj block
                    + 2 * tk * out_p * cd_size       # fts block
                    + 2 * tm * out_p * out_size      # output block
                    + tm * out_p * 4                 # f32 accumulator scratch
                    + 2 * out_p * 4)                 # bias

        tm, tk = _select_tiles(n_pad, budget, bytes_b)
        vmem_limit = max(budget, bytes_b(tm, tk) + 8 * _MIB)
        grid = (B, n_pad // tm, n_pad // tk)

        out = pl.pallas_call(
            _gcn_propagate_kernel,
            out_shape=out_shape,
            grid_spec=pltpu.PrefetchScalarGridSpec(
                num_scalar_prefetch=0,
                grid=grid,
                in_specs=[
                    adj_spec(tm, tk),
                    pl.BlockSpec((pl.Squeezed(), tk, out_p), lambda b, i, k: (b, k, 0)),
                    bias_spec,
                ],
                out_specs=out_spec(tm),
                scratch_shapes=[pltpu.VMEM((tm, out_p), jnp.float32)],
            ),
            compiler_params=pltpu.CompilerParams(
                dimension_semantics=("parallel", "parallel", "arbitrary"),
                vmem_limit_bytes=vmem_limit,
            ),
        )(adj_p, fts, bias_p)

    # TODO(synk): sparse=True (torch.spmm) path and dropout (drop_prob>0) are
    # not implemented; dense bmm forward only.
    if n_pad == N and out_p == out_ft:
        return out
    return out[:, :N, :out_ft]


def _xavier_uniform(key, out_ft, in_ft):
    # Matches torch.nn.init.xavier_uniform_ for a (out_ft, in_ft) weight.
    limit = (6.0 / (in_ft + out_ft)) ** 0.5
    return jax.random.uniform(key, (out_ft, in_ft), jnp.float32, -limit, limit)


def _reference(seq, adj, weight, bias):
    fts = jnp.einsum("bni,oi->bno", seq, weight)
    return jnp.maximum(jnp.einsum("bij,bjf->bif", adj, fts) + bias, 0.0)


def _make_inputs(key, B, N, in_ft, out_ft):
    k_seq, k_adj, k_w = jax.random.split(key, 3)
    seq = jax.random.normal(k_seq, (B, N, in_ft), dtype=jnp.float32)
    a_raw = jax.random.uniform(k_adj, (B, N, N), dtype=jnp.float32)
    a_sym = 0.5 * (a_raw + jnp.transpose(a_raw, (0, 2, 1)))
    adj = a_sym / jnp.sum(a_sym, axis=-1, keepdims=True)
    weight = _xavier_uniform(k_w, out_ft, in_ft)
    bias = jnp.zeros((out_ft,), dtype=jnp.float32)  # module inits bias to 0.0
    return seq, adj, weight, bias


if __name__ == "__main__":
    key = jax.random.PRNGKey(0)
    k1, k2 = jax.random.split(key)

    # Case 1: in_ft < out_ft -> propagate-first kernel (fused projection), f32.
    seq, adj, weight, bias = _make_inputs(k1, B=2, N=16, in_ft=8, out_ft=32)
    out = jax.block_until_ready(
        gcn_forward(seq, adj, weight, bias, compute_dtype=jnp.float32))
    ref = _reference(seq, adj, weight, bias)
    assert out.shape == ref.shape
    assert jnp.allclose(out, ref, atol=1e-5, rtol=1e-5)

    # Case 2: out_ft <= in_ft -> project-first (XLA GEMM) + propagate kernel,
    # with a non-zero bias to exercise the bias path, f32.
    seq2, adj2, weight2, _ = _make_inputs(k2, B=2, N=16, in_ft=64, out_ft=16)
    bias2 = jnp.linspace(-0.5, 0.5, 16, dtype=jnp.float32)
    out2 = jax.block_until_ready(
        gcn_forward(seq2, adj2, weight2, bias2, compute_dtype=jnp.float32))
    ref2 = _reference(seq2, adj2, weight2, bias2)
    assert jnp.allclose(out2, ref2, atol=1e-5, rtol=1e-5)

    # Case 3: default bf16 adjacency/feature stream (f32 accumulation/epilogue).
    out3 = jax.block_until_ready(gcn_forward(seq, adj, weight, bias))
    assert jnp.allclose(out3, ref, atol=5e-2, rtol=5e-2)

    print("KERNEL_OK")
</pallas_src>

<mosaic_0001>
module attributes {stable_mosaic.version = 11 : i64} {
  func.func @_gcn_propagate_project_kernel(%arg0: i32, %arg1: i32, %arg2: i32, %arg3: memref<1x128x128xf32, #tpu.memory_space<vmem>>, %arg4: memref<1x128x128xf32, #tpu.memory_space<vmem>>, %arg5: memref<128x128xf32, #tpu.memory_space<vmem>>, %arg6: memref<1x128xf32, #tpu.memory_space<vmem>>, %arg7: memref<1x128x128xf32, #tpu.memory_space<vmem>>, %arg8: memref<128x128xf32, #tpu.memory_space<vmem>>) attributes {dimension_semantics = [#tpu.dimension_semantics<parallel>, #tpu.dimension_semantics<parallel>, #tpu.dimension_semantics<arbitrary>], iteration_bounds = array<i64: 2, 1, 1>, scalar_prefetch = 0 : i64, scratch_operands = 1 : i64, tpu.core_type = #tpu.core_type<tc>, window_params = [{transform_indices = @transform_0, window_bounds = array<i64: 1, 128, 128>}, {transform_indices = @transform_1, window_bounds = array<i64: 1, 128, 128>}, {pipeline_mode = #tpu.pipeline_mode<synchronous>, transform_indices = @transform_2, window_bounds = array<i64: 128, 128>}, {pipeline_mode = #tpu.pipeline_mode<synchronous>, transform_indices = @transform_3, window_bounds = array<i64: 1, 128>}, {transform_indices = @transform_4, window_bounds = array<i64: 1, 128, 128>}]} {
    %c0_i32 = arith.constant 0 : i32
    %0 = arith.cmpi eq, %arg2, %c0_i32 : i32
    %1 = arith.extui %0 : i1 to i32
    %c0_i32_0 = arith.constant 0 : i32
    %2 = arith.cmpi ne, %1, %c0_i32_0 : i32
    scf.if %2 {
      %cst_12 = arith.constant 0.000000e+00 : f32
      %14 = vector.broadcast %cst_12 : f32 to vector<128x128xf32>
      %c0_13 = arith.constant 0 : index
      %c0_14 = arith.constant 0 : index
      %15 = vector.load %arg8[%c0_13, %c0_14] : memref<128x128xf32, #tpu.memory_space<vmem>>, vector<128x128xf32>
      tpu.vector_store %arg8[%c0_13, %c0_14], %14 {strides = array<i32>} : memref<128x128xf32, #tpu.memory_space<vmem>>, vector<128x128xf32>,
    } else {
    }
    %c0 = arith.constant 0 : index
    %c0_1 = arith.constant 0 : index
    %3 = vector.load %arg8[%c0, %c0_1] : memref<128x128xf32, #tpu.memory_space<vmem>>, vector<128x128xf32>
    %c0_2 = arith.constant 0 : index
    %c0_3 = arith.constant 0 : index
    %c0_4 = arith.constant 0 : index
    %4 = vector.load %arg3[%c0_2, %c0_3, %c0_4] : memref<1x128x128xf32, #tpu.memory_space<vmem>>, vector<1x128x128xf32>
    %5 = vector.shape_cast %4 : vector<1x128x128xf32> to vector<128x128xf32>
    %c0_5 = arith.constant 0 : index
    %c0_6 = arith.constant 0 : index
    %c0_7 = arith.constant 0 : index
    %6 = vector.load %arg4[%c0_5, %c0_6, %c0_7] : memref<1x128x128xf32, #tpu.memory_space<vmem>>, vector<1x128x128xf32>
    %7 = vector.shape_cast %6 : vector<1x128x128xf32> to vector<128x128xf32>
    %cst = arith.constant dense<0.000000e+00> : vector<128x128xf32>
    %8 = tpu.matmul %5, %7, %cst {dimension_numbers = #tpu.dot_dimension_numbers<[1], [0], [0], [1], [0, 0, 1, 1], [], []>} : vector<128x128xf32>, vector<128x128xf32>, vector<128x128xf32> -> vector<128x128xf32>
    %9 = arith.addf %3, %8 : vector<128x128xf32>
    %c0_8 = arith.constant 0 : index
    %c0_9 = arith.constant 0 : index
    %10 = vector.load %arg8[%c0_8, %c0_9] : memref<128x128xf32, #tpu.memory_space<vmem>>, vector<128x128xf32>
    tpu.vector_store %arg8[%c0_8, %c0_9], %9 {strides = array<i32>} : memref<128x128xf32, #tpu.memory_space<vmem>>, vector<128x128xf32>,
    %c0_i32_10 = arith.constant 0 : i32
    %11 = arith.cmpi eq, %arg2, %c0_i32_10 : i32
    %12 = arith.extui %11 : i1 to i32
    %c0_i32_11 = arith.constant 0 : i32
    %13 = arith.cmpi ne, %12, %c0_i32_11 : i32
    scf.if %13 {
      %c0_12 = arith.constant 0 : index
      %c0_13 = arith.constant 0 : index
      %14 = vector.load %arg8[%c0_12, %c0_13] : memref<128x128xf32, #tpu.memory_space<vmem>>, vector<128x128xf32>
      %c0_14 = arith.constant 0 : index
      %c0_15 = arith.constant 0 : index
      %15 = vector.load %arg5[%c0_14, %c0_15] : memref<128x128xf32, #tpu.memory_space<vmem>>, vector<128x128xf32>
      %cst_16 = arith.constant dense<0.000000e+00> : vector<128x128xf32>
      %16 = tpu.matmul %14, %15, %cst_16 {dimension_numbers = #tpu.dot_dimension_numbers<[1], [0], [0], [1], [0, 0, 1, 1], [], []>} : vector<128x128xf32>, vector<128x128xf32>, vector<128x128xf32> -> vector<128x128xf32>
      %c0_17 = arith.constant 0 : index
      %c0_18 = arith.constant 0 : index
      %17 = vector.load %arg6[%c0_17, %c0_18] : memref<1x128xf32, #tpu.memory_space<vmem>>, vector<1x128xf32>
      %18 = vector.broadcast %17 : vector<1x128xf32> to vector<128x128xf32>
      %19 = arith.addf %16, %18 : vector<128x128xf32>
      %cst_19 = arith.constant 0.000000e+00 : f32
      %20 = vector.broadcast %cst_19 : f32 to vector<128x128xf32>
      %21 = arith.maximumf %19, %20 : vector<128x128xf32>
      %c0_20 = arith.constant 0 : index
      %c0_21 = arith.constant 0 : index
      %c0_22 = arith.constant 0 : index
      %22 = vector.load %arg7[%c0_20, %c0_21, %c0_22] : memref<1x128x128xf32, #tpu.memory_space<vmem>>, vector<1x128x128xf32>
      %23 = vector.shape_cast %22 : vector<1x128x128xf32> to vector<128x128xf32>
      %24 = vector.shape_cast %21 : vector<128x128xf32> to vector<1x128x128xf32>
      tpu.vector_store %arg7[%c0_20, %c0_21, %c0_22], %24 {strides = array<i32>} : memref<1x128x128xf32, #tpu.memory_space<vmem>>, vector<1x128x128xf32>,
    } else {
    }
    return
  }
  func.func @transform_0(%arg0: i32, %arg1: i32, %arg2: i32) -> (i32, i32, i32) {
    %c0_i32 = arith.constant 0 : i32
    return %arg0, %arg1, %arg2 : i32, i32, i32
  }
  func.func @transform_1(%arg0: i32, %arg1: i32, %arg2: i32) -> (i32, i32, i32) {
    %c0_i32 = arith.constant 0 : i32
    %c0_i32_0 = arith.constant 0 : i32
    return %arg0, %arg2, %c0_i32 : i32, i32, i32
  }
  func.func @transform_2(%arg0: i32, %arg1: i32, %arg2: i32) -> (i32, i32) {
    %c0_i32 = arith.constant 0 : i32
    %c0_i32_0 = arith.constant 0 : i32
    %c0_i32_1 = arith.constant 0 : i32
    return %c0_i32, %c0_i32_0 : i32, i32
  }
  func.func @transform_3(%arg0: i32, %arg1: i32, %arg2: i32) -> (i32, i32) {
    %c0_i32 = arith.constant 0 : i32
    %c0_i32_0 = arith.constant 0 : i32
    %c0_i32_1 = arith.constant 0 : i32
    return %c0_i32, %c0_i32_0 : i32, i32
  }
  func.func @transform_4(%arg0: i32, %arg1: i32, %arg2: i32) -> (i32, i32, i32) {
    %c0_i32 = arith.constant 0 : i32
    %c0_i32_0 = arith.constant 0 : i32
    return %arg0, %arg1, %c0_i32 : i32, i32, i32
  }
}

</mosaic_0001>

<llo_original>
// kernel: tpu_custom_call.1
$region0: #{tpu_custom_call.1}
  #allocation0 [shape = 'u32[]', space=smem, size = 0x4, offset = 0x4, fixed_abs, tag = 'smem constant byte address 0x4 - core index']
  #allocation1 [shape = 'u32[72,128]{1,0:T(1,128)}', space=vmem, size = 0x9000, scoped, tag = 'internal scratch']
  #allocation2 [shape = 'f32[128,128]{1,0:T(8,128)}', space=vmem, size = 0x10000, scoped, tag = 'scratch operand']
  %s0 = inlined_call_operand.hbm [shape: f32[2,128,128], index: 0, kind: input, shape index: {}]
  %s1 = inlined_call_operand.hbm [shape: f32[2,128,128], index: 1, kind: input, shape index: {}]
  %s2 = inlined_call_operand.hbm [shape: f32[128,128], index: 2, kind: input, shape index: {}]
  %s3 = inlined_call_operand.vmem [shape: f32[1,128], index: 3, kind: input, shape index: {}]
  %s4 = inlined_call_operand.hbm [shape: f32[2,128,128], index: 4, kind: output, shape index: {}]
  %s5 = sld [smem:[#allocation0]]
  $region69: #{tpu_custom_call.1} parent=0
    _
  %s7 = ssub.s32 1, %s5
  %s8 = scalar_select 0, %s7, %s5
  $region1: #{tpu_custom_call.1} parent=0
    #allocation3 [shape = 'u8[131072]{0}', space=vmem, size = 0x20000, scoped, tag = 'input window, operand 0']
    #allocation4 [shape = 's32[2]{0}', space=sflag, size = 0x8, scoped, tag = 'scoped memory for tpu_custom_call.1']
    #allocation5 [shape = 's32[2]{0}', space=sflag, size = 0x8, scoped, tag = 'scoped memory for tpu_custom_call.1']
    #allocation6 [shape = 'u8[131072]{0}', space=vmem, size = 0x20000, scoped, tag = 'input window, operand 1']
    #allocation7 [shape = 's32[2]{0}', space=sflag, size = 0x8, scoped, tag = 'scoped memory for tpu_custom_call.1']
    #allocation8 [shape = 'u8[65536]{0}', space=vmem, size = 0x10000, scoped, tag = 'input window, operand 2, single buffered']
    #allocation9 [shape = 'u8[131072]{0}', space=vmem, size = 0x20000, scoped, tag = 'output window, operand 0']
    %9 = vsyncpa [#allocation4], 0
    %s10 = scalar_lea.sflag [#allocation4], 1
    %11 = vsyncpa %s10, 0
    %12 = vsyncpa [#allocation7], 0
    %s13 = scalar_lea.sflag [#allocation7], 1
    %14 = vsyncpa %s13, 0
    %15 = vsyncpa [#allocation5], 0
    %s16 = scalar_lea.sflag [#allocation5], 1
    %17 = vsyncpa %s16, 0
    loop: start=0, step=1, limit=4
    $region2: #{tpu_custom_call.1} parent=1 // loop_pre_header
      _
    $region3: #{tpu_custom_call.1} parent=1 // loop_header
      %s19 = sphi 0, %s23
      %p20 = scmp.ge.s32.totalorder %s19, 4
      %s26 = sphi 0, %s45
      %s27 = sphi 0, %s41
      %s28 = sphi 0, %s37
      %s29 = sphi 0, %s26
      %s30 = sphi 0, %s27
      %s31 = sphi 0, %s28
      %s32 = sphi 0, %s29
      %s33 = sphi 0, %s30
      %s34 = sphi 0, %s31
      %s52 = sphi 0, %s54
      %s55 = sphi 0, %s52
      %s56 = sphi 0, %s55
      %s72 = sphi 0, %s56
      %s80 = sphi 0, %s82
      %s83 = sphi 0, %s80
      %s84 = sphi 0, %s83
      %s100 = sphi 0, %s84
      %s104 = sphi 0, %s104
      %s106 = sphi 0, %s104
      %s107 = sphi 0, %s106
      %s121 = sphi 0, %s107
      %s125 = sphi 0, %s125
      %s127 = sphi 0, %s125
      %s128 = sphi 0, %s127
      %s142 = sphi 0, %s128
      %s150 = sphi 0, %s152
      %s153 = sphi 0, %s150
      %s154 = sphi 0, %s153
      %s170 = sphi 0, %s154
    $region4: #{tpu_custom_call.1} parent=1 // loop_header_branch
      %22 = sbr.rel (%p20) target = $region8
    $region5: #{tpu_custom_call.1} parent=1 // loop_body
      %s24 = ssub.s32 %s19, 1
      %s25 = ssub.s32 %s19, 2
      %s35 = sadd.s32 1, %s28
      %p36 = scmp.ge.s32.totalorder %s35, 1
      %s37 = scalar_select %p36, 0, %s35
      %s38 = sadd.s32 1, %s27
      %s39 = scalar_select %p36, %s38, %s27
      %p40 = scmp.ge.s32.totalorder %s39, 1
      %s41 = scalar_select %p40, 0, %s39
      %s42 = sadd.s32 1, %s26
      %s43 = scalar_select %p40, %s42, %s26
      %p44 = scmp.ge.s32.totalorder %s43, 2
      %s45 = scalar_select %p44, 0, %s43
      %s46 = ssub.s32 %s26, %s45
      %s47 = ssub.s32 %s27, %s41
      %s48 = sor.u32 %s46, %s47
      %s49 = ssub.s32 %s28, %s37
      %s50 = sor.u32 %s48, %s49
      %p51 = scmp.eq.s32.totalorder %s50, 0
      %s53 = sadd.s32 %s52, 1
      %s54 = scalar_select %p51, %s52, %s53
      %p57 = pneg %p51
      %p58 = scmp.eq.s32.totalorder %s19, 1
      %p59 = por %p57, %p58
      %p60 = scmp.ne.s32.totalorder %s52, %s55
      %p61 = scmp.eq.s32.totalorder %s19, 0
      %p62 = por %p60, %p61
      %p63 = scmp.ne.s32.totalorder %s52, %s55
      %p64 = scmp.eq.s32.totalorder %s24, 1
      %p65 = por %p63, %p64
      %p66 = scmp.ne.s32.totalorder %s55, %s56
      %p67 = scmp.eq.s32.totalorder %s24, 0
      %p68 = por %p66, %p67
      %p69 = scmp.ne.s32.totalorder %s55, %s56
      %p70 = scmp.eq.s32.totalorder %s25, 1
      %p71 = por %p69, %p70
      %p73 = scmp.ne.s32.totalorder %s56, %s72
      %p74 = scmp.eq.s32.totalorder %s25, 0
      %p75 = por %p73, %p74
      %s76 = ssub.s32 %s26, %s45
      %s77 = ssub.s32 %s28, %s37
      %s78 = sor.u32 %s76, %s77
      %p79 = scmp.eq.s32.totalorder %s78, 0
      %s81 = sadd.s32 %s80, 1
      %s82 = scalar_select %p79, %s80, %s81
      %p85 = pneg %p79
      %p86 = scmp.eq.s32.totalorder %s19, 1
      %p87 = por %p85, %p86
      %p88 = scmp.ne.s32.totalorder %s80, %s83
      %p89 = scmp.eq.s32.totalorder %s19, 0
      %p90 = por %p88, %p89
      %p91 = scmp.ne.s32.totalorder %s80, %s83
      %p92 = scmp.eq.s32.totalorder %s24, 1
      %p93 = por %p91, %p92
      %p94 = scmp.ne.s32.totalorder %s83, %s84
      %p95 = scmp.eq.s32.totalorder %s24, 0
      %p96 = por %p94, %p95
      %p97 = scmp.ne.s32.totalorder %s83, %s84
      %p98 = scmp.eq.s32.totalorder %s25, 1
      %p99 = por %p97, %p98
      %p101 = scmp.ne.s32.totalorder %s84, %s100
      %p102 = scmp.eq.s32.totalorder %s25, 0
      %p103 = por %p101, %p102
      %s105 = sadd.s32 %s104, 1
      %p108 = scmp.eq.s32.totalorder %s19, 1
      %p109 = scmp.ne.s32.totalorder %s104, %s106
      %p110 = scmp.eq.s32.totalorder %s19, 0
      %p111 = por %p109, %p110
      %p112 = scmp.ne.s32.totalorder %s104, %s106
      %p113 = scmp.eq.s32.totalorder %s24, 1
      %p114 = por %p112, %p113
      %p115 = scmp.ne.s32.totalorder %s106, %s107
      %p116 = scmp.eq.s32.totalorder %s24, 0
      %p117 = por %p115, %p116
      %p118 = scmp.ne.s32.totalorder %s106, %s107
      %p119 = scmp.eq.s32.totalorder %s25, 1
      %p120 = por %p118, %p119
      %p122 = scmp.ne.s32.totalorder %s107, %s121
      %p123 = scmp.eq.s32.totalorder %s25, 0
      %p124 = por %p122, %p123
      %s126 = sadd.s32 %s125, 1
      %p129 = scmp.eq.s32.totalorder %s19, 1
      %p130 = scmp.ne.s32.totalorder %s125, %s127
      %p131 = scmp.eq.s32.totalorder %s19, 0
      %p132 = por %p130, %p131
      %p133 = scmp.ne.s32.totalorder %s125, %s127
      %p134 = scmp.eq.s32.totalorder %s24, 1
      %p135 = por %p133, %p134
      %p136 = scmp.ne.s32.totalorder %s127, %s128
      %p137 = scmp.eq.s32.totalorder %s24, 0
      %p138 = por %p136, %p137
      %p139 = scmp.ne.s32.totalorder %s127, %s128
      %p140 = scmp.eq.s32.totalorder %s25, 1
      %p141 = por %p139, %p140
      %p143 = scmp.ne.s32.totalorder %s128, %s142
      %p144 = scmp.eq.s32.totalorder %s25, 0
      %p145 = por %p143, %p144
      %s146 = ssub.s32 %s26, %s45
      %s147 = ssub.s32 %s27, %s41
      %s148 = sor.u32 %s146, %s147
      %p149 = scmp.eq.s32.totalorder %s148, 0
      %s151 = sadd.s32 %s150, 1
      %s152 = scalar_select %p149, %s150, %s151
      %p155 = pneg %p149
      %p156 = scmp.eq.s32.totalorder %s19, 1
      %p157 = por %p155, %p156
      %p158 = scmp.ne.s32.totalorder %s150, %s153
      %p159 = scmp.eq.s32.totalorder %s19, 0
      %p160 = por %p158, %p159
      %p161 = scmp.ne.s32.totalorder %s150, %s153
      %p162 = scmp.eq.s32.totalorder %s24, 1
      %p163 = por %p161, %p162
      %p164 = scmp.ne.s32.totalorder %s153, %s154
      %p165 = scmp.eq.s32.totalorder %s24, 0
      %p166 = por %p164, %p165
      %p167 = scmp.ne.s32.totalorder %s153, %s154
      %p168 = scmp.eq.s32.totalorder %s25, 1
      %p169 = por %p167, %p168
      %p171 = scmp.ne.s32.totalorder %s154, %s170
      %p172 = scmp.eq.s32.totalorder %s25, 0
      %p173 = por %p171, %p172
      %p174 = scmp.le.s32.totalorder 1, %s19
      %p175 = scmp.lt.s32.totalorder %s19, 3
      %p176 = pnand %p174, %p175
      %p177 = pneg %p176
      // Predicated region
      $region9: #{tpu_custom_call.1} parent=5 // pred_check
        _
      $region10: #{tpu_custom_call.1} parent=5 // pred_check_branch
        %179 = sbr.rel (%p176) target = $region12
      $region11: #{tpu_custom_call.1} parent=5 // pred_region
        %s180 = ssub.s32 %s19, 1
        // Predicated region
        $region13: #{tpu_custom_call.1} parent=11 // pred_check
          %p181 = pneg %p117
        $region14: #{tpu_custom_call.1} parent=11 // pred_check_branch
          %183 = sbr.rel (%p181) target = $region16
        $region15: #{tpu_custom_call.1} parent=11 // pred_region
          %185 = vsyncadd [#allocation7], 0
          %s186 = sshll.u32 %s2, 4
          %s187 = int_to_ptr.hbm [resolvable:$true] %s186
          %s188 = sshll.u32 [#allocation8], 4
          %s189 = int_to_ptr.vmem [resolvable:$true] %s188
          %194 = dma.hbm_to_vmem [thread:$0]  %s187, 2048, %s189, [#allocation7], 128, 128, 8
        $region16: #{tpu_custom_call.1} parent=11 // pred_fallthru
          _
        // Predicated region
        $region17: #{tpu_custom_call.1} parent=11 // pred_check
          %p195 = pneg %p138
        $region18: #{tpu_custom_call.1} parent=11 // pred_check_branch
          %197 = sbr.rel (%p195) target = $region20
        $region19: #{tpu_custom_call.1} parent=11 // pred_region
          _
        $region20: #{tpu_custom_call.1} parent=11 // pred_fallthru
          _
      $region12: #{tpu_custom_call.1} parent=5 // pred_fallthru
        _
      %p198 = scmp.lt.s32.totalorder %s19, 2
      // Predicated region
      $region21: #{tpu_custom_call.1} parent=5 // pred_check
        %p199 = pneg %p198
      $region22: #{tpu_custom_call.1} parent=5 // pred_check_branch
        %201 = sbr.rel (%p199) target = $region24
      $region23: #{tpu_custom_call.1} parent=5 // pred_region
        // Predicated region
        $region25: #{tpu_custom_call.1} parent=23 // pred_check
          %p202 = pneg %p62
        $region26: #{tpu_custom_call.1} parent=23 // pred_check_branch
          %204 = sbr.rel (%p202) target = $region28
        $region27: #{tpu_custom_call.1} parent=23 // pred_region
          %s205 = sand.u32 %s52, 1
          %s206 = scalar_lea.sflag [#allocation4], %s205
          %s207 = sand.u32 %s52, 1
          %s208 = smul.addr %s207, 128
          %s209 = scalar_lea.vmem [#allocation3], %s208
          %s210 = smul.u32 16, %s27
          %212 = vsyncadd %s206, 0
          %s213 = sadd.s32 %s28, %s210
          %s214 = smul.addr %s26, 16
          %s215 = sadd.s32 %s213, %s214
          %s216 = smul.addr %s215, 8
          %s217 = scalar_lea.hbm %s0, %s216
          %s218 = sshll.u32 %s217, 4
          %s219 = int_to_ptr.hbm [resolvable:$true] %s218
          %s220 = sshll.u32 %s209, 4
          %s221 = int_to_ptr.vmem [resolvable:$true] %s220
          %226 = dma.hbm_to_vmem [thread:$0]  %s219, 2048, %s221, %s206, 128, 128, 8
        $region28: #{tpu_custom_call.1} parent=23 // pred_fallthru
          _
        // Predicated region
        $region29: #{tpu_custom_call.1} parent=23 // pred_check
          %p227 = pneg %p90
        $region30: #{tpu_custom_call.1} parent=23 // pred_check_branch
          %229 = sbr.rel (%p227) target = $region32
        $region31: #{tpu_custom_call.1} parent=23 // pred_region
          %s230 = sand.u32 %s19, 1
          %s231 = scalar_lea.sflag [#allocation7], %s230
          %s232 = sand.u32 %s80, 1
          %s233 = smul.addr %s232, 128
          %s234 = scalar_lea.vmem [#allocation6], %s233
          %s235 = smul.u32 16, %s28
          %237 = vsyncadd %s231, 0
          %s238 = smul.addr %s26, 16
          %s239 = sadd.s32 %s235, %s238
          %s240 = smul.addr %s239, 8
          %s241 = scalar_lea.hbm %s1, %s240
          %s242 = sshll.u32 %s241, 4
          %s243 = int_to_ptr.hbm [resolvable:$true] %s242
          %s244 = sshll.u32 %s234, 4
          %s245 = int_to_ptr.vmem [resolvable:$true] %s244
          %250 = dma.hbm_to_vmem [thread:$0]  %s243, 2048, %s245, %s231, 128, 128, 8
        $region32: #{tpu_custom_call.1} parent=23 // pred_fallthru
          _
      $region24: #{tpu_custom_call.1} parent=5 // pred_fallthru
        _
      %p251 = scmp.le.s32.totalorder 1, %s19
      %p252 = scmp.lt.s32.totalorder %s19, 3
      %p253 = pnand %p251, %p252
      %p254 = pneg %p253
      // Predicated region
      $region33: #{tpu_custom_call.1} parent=5 // pred_check
        _
      $region34: #{tpu_custom_call.1} parent=5 // pred_check_branch
        %256 = sbr.rel (%p253) target = $region36
      $region35: #{tpu_custom_call.1} parent=5 // pred_region
        %s257 = ssub.s32 %s19, 1
        %s258 = sand.u32 %s55, 1
        %s259 = scalar_lea.sflag [#allocation4], %s258
        %s260 = sand.u32 %s55, 1
        %s261 = smul.addr %s260, 128
        %s262 = scalar_lea.vmem [#allocation3], %s261
        // Predicated region
        $region37: #{tpu_custom_call.1} parent=35 // pred_check
          %p263 = pneg %p68
        $region38: #{tpu_custom_call.1} parent=35 // pred_check_branch
          %265 = sbr.rel (%p263) target = $region40
        $region39: #{tpu_custom_call.1} parent=35 // pred_region
          %267 = dma.done %s259, 2048
        $region40: #{tpu_custom_call.1} parent=35 // pred_fallthru
          _
        %s268 = sand.u32 %s24, 1
        %s269 = scalar_lea.sflag [#allocation7], %s268
        %s270 = sand.u32 %s83, 1
        %s271 = smul.addr %s270, 128
        %s272 = scalar_lea.vmem [#allocation6], %s271
        // Predicated region
        $region41: #{tpu_custom_call.1} parent=35 // pred_check
          %p273 = pneg %p96
        $region42: #{tpu_custom_call.1} parent=35 // pred_check_branch
          %275 = sbr.rel (%p273) target = $region44
        $region43: #{tpu_custom_call.1} parent=35 // pred_region
          %277 = dma.done %s269, 2048
        $region44: #{tpu_custom_call.1} parent=35 // pred_fallthru
          _
        // Predicated region
        $region45: #{tpu_custom_call.1} parent=35 // pred_check
          %p278 = pneg %p117
        $region46: #{tpu_custom_call.1} parent=35 // pred_check_branch
          %280 = sbr.rel (%p278) target = $region48
        $region47: #{tpu_custom_call.1} parent=35 // pred_region
          %282 = dma.done [#allocation7], 2048
        $region48: #{tpu_custom_call.1} parent=35 // pred_fallthru
          _
        %s283 = sand.u32 %s55, 1
        %s284 = scalar_lea.sflag [#allocation4], %s283
        %s285 = sand.u32 %s55, 1
        %s286 = smul.addr %s285, 128
        %s287 = scalar_lea.vmem [#allocation3], %s286
        %p288 = pneg %p68
        %p289 = pneg %p65
        %s290 = sand.u32 %s24, 1
        %s291 = scalar_lea.sflag [#allocation7], %s290
        %s292 = sand.u32 %s83, 1
        %s293 = smul.addr %s292, 128
        %s294 = scalar_lea.vmem [#allocation6], %s293
        %p295 = pneg %p96
        %p296 = pneg %p93
        %p297 = pneg %p117
        %p298 = pneg %p114
        %p299 = pneg %p138
        %p300 = pneg %p135
        %p301 = pneg %p166
        %p302 = pneg %p163
        %s303 = sand.u32 %s153, 1
        %s304 = scalar_lea.sflag [#allocation5], %s303
        %s305 = sand.u32 %s153, 1
        %s306 = smul.addr %s305, 128
        %s307 = scalar_lea.vmem [#allocation9], %s306
        %s308 = smul.u32 16, %s30
        %s309 = smul.u32 16, %s31
        %s310 = smul.u32 16, %s30
        %p311 = scmp.eq.s32.totalorder %s31, 0
        // Predicated region
        $region49: #{tpu_custom_call.1} parent=35 // pred_check
          %p312 = pneg %p311
        $region50: #{tpu_custom_call.1} parent=35 // pred_check_branch
          %314 = sbr.rel (%p312) target = $region52
        $region51: #{tpu_custom_call.1} parent=35 // pred_region
          %315 = vst [vmem:[#allocation2] sm:$0xff] 0.0
          %316 = vst [vmem:[#allocation2 + $0x8] sm:$0xff] 0.0
          %317 = vst [vmem:[#allocation2 + $0x10] sm:$0xff] 0.0
          %318 = vst [vmem:[#allocation2 + $0x18] sm:$0xff] 0.0
          %319 = vst [vmem:[#allocation2 + $0x20] sm:$0xff] 0.0
          %320 = vst [vmem:[#allocation2 + $0x28] sm:$0xff] 0.0
          %321 = vst [vmem:[#allocation2 + $0x30] sm:$0xff] 0.0
          %322 = vst [vmem:[#allocation2 + $0x38] sm:$0xff] 0.0
          %323 = vst [vmem:[#allocation2 + $0x40] sm:$0xff] 0.0
          %324 = vst [vmem:[#allocation2 + $0x48] sm:$0xff] 0.0
          %325 = vst [vmem:[#allocation2 + $0x50] sm:$0xff] 0.0
          %326 = vst [vmem:[#allocation2 + $0x58] sm:$0xff] 0.0
          %327 = vst [vmem:[#allocation2 + $0x60] sm:$0xff] 0.0
          %328 = vst [vmem:[#allocation2 + $0x68] sm:$0xff] 0.0
          %329 = vst [vmem:[#allocation2 + $0x70] sm:$0xff] 0.0
          %330 = vst [vmem:[#allocation2 + $0x78] sm:$0xff] 0.0
        $region52: #{tpu_custom_call.1} parent=35 // pred_fallthru
          _
        %v331 = vld [vmem:[#allocation2] sm:$0xff]
        %v332 = vld [vmem:[#allocation2 + $0x8] sm:$0xff]
        %v333 = vld [vmem:[#allocation2 + $0x10] sm:$0xff]
        %v334 = vld [vmem:[#allocation2 + $0x18] sm:$0xff]
        %v335 = vld [vmem:[#allocation2 + $0x20] sm:$0xff]
        %v336 = vld [vmem:[#allocation2 + $0x28] sm:$0xff]
        %v337 = vld [vmem:[#allocation2 + $0x30] sm:$0xff]
        %v338 = vld [vmem:[#allocation2 + $0x38] sm:$0xff]
        %v339 = vld [vmem:[#allocation2 + $0x40] sm:$0xff]
        %v340 = vld [vmem:[#allocation2 + $0x48] sm:$0xff]
        %v341 = vld [vmem:[#allocation2 + $0x50] sm:$0xff]
        %v342 = vld [vmem:[#allocation2 + $0x58] sm:$0xff]
        %v343 = vld [vmem:[#allocation2 + $0x60] sm:$0xff]
        %v344 = vld [vmem:[#allocation2 + $0x68] sm:$0xff]
        %v345 = vld [vmem:[#allocation2 + $0x70] sm:$0xff]
        %v346 = vld [vmem:[#allocation2 + $0x78] sm:$0xff]
        %v347 = vld [vmem:[%s262] sm:$0xff]
        %v348 = vld [vmem:[%s262 + $0x8] sm:$0xff]
        %v349 = vld [vmem:[%s262 + $0x10] sm:$0xff]
        %v350 = vld [vmem:[%s262 + $0x18] sm:$0xff]
        %v351 = vld [vmem:[%s262 + $0x20] sm:$0xff]
        %v352 = vld [vmem:[%s262 + $0x28] sm:$0xff]
        %v353 = vld [vmem:[%s262 + $0x30] sm:$0xff]
        %v354 = vld [vmem:[%s262 + $0x38] sm:$0xff]
        %v355 = vld [vmem:[%s262 + $0x40] sm:$0xff]
        %v356 = vld [vmem:[%s262 + $0x48] sm:$0xff]
        %v357 = vld [vmem:[%s262 + $0x50] sm:$0xff]
        %v358 = vld [vmem:[%s262 + $0x58] sm:$0xff]
        %v359 = vld [vmem:[%s262 + $0x60] sm:$0xff]
        %v360 = vld [vmem:[%s262 + $0x68] sm:$0xff]
        %v361 = vld [vmem:[%s262 + $0x70] sm:$0xff]
        %v362 = vld [vmem:[%s262 + $0x78] sm:$0xff]
        %v363 = vld [vmem:[%s272] sm:$0xff]
        %v364 = vld [vmem:[%s272 + $0x8] sm:$0xff]
        %v365 = vld [vmem:[%s272 + $0x10] sm:$0xff]
        %v366 = vld [vmem:[%s272 + $0x18] sm:$0xff]
        %v367 = vld [vmem:[%s272 + $0x20] sm:$0xff]
        %v368 = vld [vmem:[%s272 + $0x28] sm:$0xff]
        %v369 = vld [vmem:[%s272 + $0x30] sm:$0xff]
        %v370 = vld [vmem:[%s272 + $0x38] sm:$0xff]
        %v371 = vld [vmem:[%s272 + $0x40] sm:$0xff]
        %v372 = vld [vmem:[%s272 + $0x48] sm:$0xff]
        %v373 = vld [vmem:[%s272 + $0x50] sm:$0xff]
        %v374 = vld [vmem:[%s272 + $0x58] sm:$0xff]
        %v375 = vld [vmem:[%s272 + $0x60] sm:$0xff]
        %v376 = vld [vmem:[%s272 + $0x68] sm:$0xff]
        %v377 = vld [vmem:[%s272 + $0x70] sm:$0xff]
        %v378 = vld [vmem:[%s272 + $0x78] sm:$0xff]
        %379 = vmatpush.msra.mxu0 %v378
        %380 = vmatpush.msra.mxu0 %v377
        %381 = vmatpush.msra.mxu0 %v376
        %382 = vmatpush.msra.mxu0 %v375
        %383 = vmatpush.msra.mxu0 %v374
        %384 = vmatpush.msra.mxu0 %v373
        %385 = vmatpush.msra.mxu0 %v372
        %386 = vmatpush.msra.mxu0 %v371
        %387 = vmatpush.msra.mxu0 %v370
        %388 = vmatpush.msra.mxu0 %v369
        %389 = vmatpush.msra.mxu0 %v368
        %390 = vmatpush.msra.mxu0 %v367
        %391 = vmatpush.msra.mxu0 %v366
        %392 = vmatpush.msra.mxu0 %v365
        %393 = vmatpush.msra.mxu0 %v364
        %394 = vmatpush.msra.mxu0 %v363
        %395 = vmatmul.f32.gmra.mxu0 %v347
        %v396 = vpop.f32.mrf.mxu0
        %v397 = vadd.f32 0.0, %v396
        %398 = vmatmul.f32.gmra.mxu0 %v348
        %v399 = vpop.f32.mrf.mxu0
        %v400 = vadd.f32 0.0, %v399
        %401 = vmatmul.f32.gmra.mxu0 %v349
        %v402 = vpop.f32.mrf.mxu0
        %v403 = vadd.f32 0.0, %v402
        %404 = vmatmul.f32.gmra.mxu0 %v350
        %v405 = vpop.f32.mrf.mxu0
        %v406 = vadd.f32 0.0, %v405
        %407 = vmatmul.f32.gmra.mxu0 %v351
        %v408 = vpop.f32.mrf.mxu0
        %v409 = vadd.f32 0.0, %v408
        %410 = vmatmul.f32.gmra.mxu0 %v352
        %v411 = vpop.f32.mrf.mxu0
        %v412 = vadd.f32 0.0, %v411
        %413 = vmatmul.f32.gmra.mxu0 %v353
        %v414 = vpop.f32.mrf.mxu0
        %v415 = vadd.f32 0.0, %v414
        %416 = vmatmul.f32.gmra.mxu0 %v354
        %v417 = vpop.f32.mrf.mxu0
        %v418 = vadd.f32 0.0, %v417
        %419 = vmatmul.f32.gmra.mxu0 %v355
        %v420 = vpop.f32.mrf.mxu0
        %v421 = vadd.f32 0.0, %v420
        %422 = vmatmul.f32.gmra.mxu0 %v356
        %v423 = vpop.f32.mrf.mxu0
        %v424 = vadd.f32 0.0, %v423
        %425 = vmatmul.f32.gmra.mxu0 %v357
        %v426 = vpop.f32.mrf.mxu0
        %v427 = vadd.f32 0.0, %v426
        %428 = vmatmul.f32.gmra.mxu0 %v358
        %v429 = vpop.f32.mrf.mxu0
        %v430 = vadd.f32 0.0, %v429
        %431 = vmatmul.f32.gmra.mxu0 %v359
        %v432 = vpop.f32.mrf.mxu0
        %v433 = vadd.f32 0.0, %v432
        %434 = vmatmul.f32.gmra.mxu0 %v360
        %v435 = vpop.f32.mrf.mxu0
        %v436 = vadd.f32 0.0, %v435
        %437 = vmatmul.f32.gmra.mxu0 %v361
        %v438 = vpop.f32.mrf.mxu0
        %v439 = vadd.f32 0.0, %v438
        %440 = vmatmul.f32.gmra.mxu0 %v362
        %v441 = vpop.f32.mrf.mxu0
        %v442 = vadd.f32 0.0, %v441
        %443 = vdwg.mxu0
        %v444 = vadd.f32 %v331, %v397
        %v445 = vadd.f32 %v332, %v400
        %v446 = vadd.f32 %v333, %v403
        %v447 = vadd.f32 %v334, %v406
        %v448 = vadd.f32 %v335, %v409
        %v449 = vadd.f32 %v336, %v412
        %v450 = vadd.f32 %v337, %v415
        %v451 = vadd.f32 %v338, %v418
        %v452 = vadd.f32 %v339, %v421
        %v453 = vadd.f32 %v340, %v424
        %v454 = vadd.f32 %v341, %v427
        %v455 = vadd.f32 %v342, %v430
        %v456 = vadd.f32 %v343, %v433
        %v457 = vadd.f32 %v344, %v436
        %v458 = vadd.f32 %v345, %v439
        %v459 = vadd.f32 %v346, %v442
        %460 = vst [vmem:[#allocation2] sm:$0xff] %v444
        %461 = vst [vmem:[#allocation2 + $0x8] sm:$0xff] %v445
        %462 = vst [vmem:[#allocation2 + $0x10] sm:$0xff] %v446
        %463 = vst [vmem:[#allocation2 + $0x18] sm:$0xff] %v447
        %464 = vst [vmem:[#allocation2 + $0x20] sm:$0xff] %v448
        %465 = vst [vmem:[#allocation2 + $0x28] sm:$0xff] %v449
        %466 = vst [vmem:[#allocation2 + $0x30] sm:$0xff] %v450
        %467 = vst [vmem:[#allocation2 + $0x38] sm:$0xff] %v451
        %468 = vst [vmem:[#allocation2 + $0x40] sm:$0xff] %v452
        %469 = vst [vmem:[#allocation2 + $0x48] sm:$0xff] %v453
        %470 = vst [vmem:[#allocation2 + $0x50] sm:$0xff] %v454
        %471 = vst [vmem:[#allocation2 + $0x58] sm:$0xff] %v455
        %472 = vst [vmem:[#allocation2 + $0x60] sm:$0xff] %v456
        %473 = vst [vmem:[#allocation2 + $0x68] sm:$0xff] %v457
        %474 = vst [vmem:[#allocation2 + $0x70] sm:$0xff] %v458
        %475 = vst [vmem:[#allocation2 + $0x78] sm:$0xff] %v459
        // Predicated region
        $region53: #{tpu_custom_call.1} parent=35 // pred_check
          %p476 = pneg %p311
        $region54: #{tpu_custom_call.1} parent=35 // pred_check_branch
          %478 = sbr.rel (%p476) target = $region56
        $region55: #{tpu_custom_call.1} parent=35 // pred_region
          %v479 = vld [vmem:[#allocation2] sm:$0xff]
          %v480 = vld [vmem:[#allocation2 + $0x8] sm:$0xff]
          %v481 = vld [vmem:[#allocation2 + $0x10] sm:$0xff]
          %v482 = vld [vmem:[#allocation2 + $0x18] sm:$0xff]
          %v483 = vld [vmem:[#allocation2 + $0x20] sm:$0xff]
          %v484 = vld [vmem:[#allocation2 + $0x28] sm:$0xff]
          %v485 = vld [vmem:[#allocation2 + $0x30] sm:$0xff]
          %v486 = vld [vmem:[#allocation2 + $0x38] sm:$0xff]
          %v487 = vld [vmem:[#allocation2 + $0x40] sm:$0xff]
          %v488 = vld [vmem:[#allocation2 + $0x48] sm:$0xff]
          %v489 = vld [vmem:[#allocation2 + $0x50] sm:$0xff]
          %v490 = vld [vmem:[#allocation2 + $0x58] sm:$0xff]
          %v491 = vld [vmem:[#allocation2 + $0x60] sm:$0xff]
          %v492 = vld [vmem:[#allocation2 + $0x68] sm:$0xff]
          %v493 = vld [vmem:[#allocation2 + $0x70] sm:$0xff]
          %v494 = vld [vmem:[#allocation2 + $0x78] sm:$0xff]
          %v495 = vld [vmem:[#allocation8] sm:$0xff]
          %v496 = vld [vmem:[#allocation8 + $0x8] sm:$0xff]
          %v497 = vld [vmem:[#allocation8 + $0x10] sm:$0xff]
          %v498 = vld [vmem:[#allocation8 + $0x18] sm:$0xff]
          %v499 = vld [vmem:[#allocation8 + $0x20] sm:$0xff]
          %v500 = vld [vmem:[#allocation8 + $0x28] sm:$0xff]
          %v501 = vld [vmem:[#allocation8 + $0x30] sm:$0xff]
          %v502 = vld [vmem:[#allocation8 + $0x38] sm:$0xff]
          %v503 = vld [vmem:[#allocation8 + $0x40] sm:$0xff]
          %v504 = vld [vmem:[#allocation8 + $0x48] sm:$0xff]
          %v505 = vld [vmem:[#allocation8 + $0x50] sm:$0xff]
          %v506 = vld [vmem:[#allocation8 + $0x58] sm:$0xff]
          %v507 = vld [vmem:[#allocation8 + $0x60] sm:$0xff]
          %v508 = vld [vmem:[#allocation8 + $0x68] sm:$0xff]
          %v509 = vld [vmem:[#allocation8 + $0x70] sm:$0xff]
          %v510 = vld [vmem:[#allocation8 + $0x78] sm:$0xff]
          %v511 = vld [vmem:[%s3] sm:$0x1]
          %v513 = vperm.slane %v511, 0
          %515 = vmatpush.msra.mxu0 %v510
          %516 = vmatpush.msra.mxu0 %v509
          %517 = vmatpush.msra.mxu0 %v508
          %518 = vmatpush.msra.mxu0 %v507
          %519 = vmatpush.msra.mxu0 %v506
          %520 = vmatpush.msra.mxu0 %v505
          %521 = vmatpush.msra.mxu0 %v504
          %522 = vmatpush.msra.mxu0 %v503
          %523 = vmatpush.msra.mxu0 %v502
          %524 = vmatpush.msra.mxu0 %v501
          %525 = vmatpush.msra.mxu0 %v500
          %526 = vmatpush.msra.mxu0 %v499
          %527 = vmatpush.msra.mxu0 %v498
          %528 = vmatpush.msra.mxu0 %v497
          %529 = vmatpush.msra.mxu0 %v496
          %530 = vmatpush.msra.mxu0 %v495
          %531 = vmatmul.f32.gmra.mxu0 %v479
          %v532 = vpop.f32.mrf.mxu0
          %v533 = vadd.f32 %v513, %v532
          %534 = vmatmul.f32.gmra.mxu0 %v480
          %v535 = vpop.f32.mrf.mxu0
          %v536 = vadd.f32 %v513, %v535
          %537 = vmatmul.f32.gmra.mxu0 %v481
          %v538 = vpop.f32.mrf.mxu0
          %v539 = vadd.f32 %v513, %v538
          %540 = vmatmul.f32.gmra.mxu0 %v482
          %v541 = vpop.f32.mrf.mxu0
          %v542 = vadd.f32 %v513, %v541
          %543 = vmatmul.f32.gmra.mxu0 %v483
          %v544 = vpop.f32.mrf.mxu0
          %v545 = vadd.f32 %v513, %v544
          %546 = vmatmul.f32.gmra.mxu0 %v484
          %v547 = vpop.f32.mrf.mxu0
          %v548 = vadd.f32 %v513, %v547
          %549 = vmatmul.f32.gmra.mxu0 %v485
          %v550 = vpop.f32.mrf.mxu0
          %v551 = vadd.f32 %v513, %v550
          %552 = vmatmul.f32.gmra.mxu0 %v486
          %v553 = vpop.f32.mrf.mxu0
          %v554 = vadd.f32 %v513, %v553
          %555 = vmatmul.f32.gmra.mxu0 %v487
          %v556 = vpop.f32.mrf.mxu0
          %v557 = vadd.f32 %v513, %v556
          %558 = vmatmul.f32.gmra.mxu0 %v488
          %v559 = vpop.f32.mrf.mxu0
          %v560 = vadd.f32 %v513, %v559
          %561 = vmatmul.f32.gmra.mxu0 %v489
          %v562 = vpop.f32.mrf.mxu0
          %v563 = vadd.f32 %v513, %v562
          %564 = vmatmul.f32.gmra.mxu0 %v490
          %v565 = vpop.f32.mrf.mxu0
          %v566 = vadd.f32 %v513, %v565
          %567 = vmatmul.f32.gmra.mxu0 %v491
          %v568 = vpop.f32.mrf.mxu0
          %v569 = vadd.f32 %v513, %v568
          %570 = vmatmul.f32.gmra.mxu0 %v492
          %v571 = vpop.f32.mrf.mxu0
          %v572 = vadd.f32 %v513, %v571
          %573 = vmatmul.f32.gmra.mxu0 %v493
          %v574 = vpop.f32.mrf.mxu0
          %v575 = vadd.f32 %v513, %v574
          %576 = vmatmul.f32.gmra.mxu0 %v494
          %v577 = vpop.f32.mrf.mxu0
          %v578 = vadd.f32 %v513, %v577
          %579 = vdwg.mxu0
          %v580 = vmax.f32 %v533, 0.0
          %v581 = vmax.f32 %v536, 0.0
          %v582 = vmax.f32 %v539, 0.0
          %v583 = vmax.f32 %v542, 0.0
          %v584 = vmax.f32 %v545, 0.0
          %v585 = vmax.f32 %v548, 0.0
          %v586 = vmax.f32 %v551, 0.0
          %v587 = vmax.f32 %v554, 0.0
          %v588 = vmax.f32 %v557, 0.0
          %v589 = vmax.f32 %v560, 0.0
          %v590 = vmax.f32 %v563, 0.0
          %v591 = vmax.f32 %v566, 0.0
          %v592 = vmax.f32 %v569, 0.0
          %v593 = vmax.f32 %v572, 0.0
          %v594 = vmax.f32 %v575, 0.0
          %v595 = vmax.f32 %v578, 0.0
          %596 = vst [vmem:[%s307] sm:$0xff] %v580
          %597 = vst [vmem:[%s307 + $0x8] sm:$0xff] %v581
          %598 = vst [vmem:[%s307 + $0x10] sm:$0xff] %v582
          %599 = vst [vmem:[%s307 + $0x18] sm:$0xff] %v583
          %600 = vst [vmem:[%s307 + $0x20] sm:$0xff] %v584
          %601 = vst [vmem:[%s307 + $0x28] sm:$0xff] %v585
          %602 = vst [vmem:[%s307 + $0x30] sm:$0xff] %v586
          %603 = vst [vmem:[%s307 + $0x38] sm:$0xff] %v587
          %604 = vst [vmem:[%s307 + $0x40] sm:$0xff] %v588
          %605 = vst [vmem:[%s307 + $0x48] sm:$0xff] %v589
          %606 = vst [vmem:[%s307 + $0x50] sm:$0xff] %v590
          %607 = vst [vmem:[%s307 + $0x58] sm:$0xff] %v591
          %608 = vst [vmem:[%s307 + $0x60] sm:$0xff] %v592
          %609 = vst [vmem:[%s307 + $0x68] sm:$0xff] %v593
          %610 = vst [vmem:[%s307 + $0x70] sm:$0xff] %v594
          %611 = vst [vmem:[%s307 + $0x78] sm:$0xff] %v595
        $region56: #{tpu_custom_call.1} parent=35 // pred_fallthru
          _
        %s612 = sand.u32 %s153, 1
        %s613 = scalar_lea.sflag [#allocation5], %s612
        %s614 = sand.u32 %s153, 1
        %s615 = smul.addr %s614, 128
        %s616 = scalar_lea.vmem [#allocation9], %s615
        // Predicated region
        $region57: #{tpu_custom_call.1} parent=35 // pred_check
          %p617 = pneg %p163
        $region58: #{tpu_custom_call.1} parent=35 // pred_check_branch
          %619 = sbr.rel (%p617) target = $region60
        $region59: #{tpu_custom_call.1} parent=35 // pred_region
          %s620 = smul.u32 16, %s30
          %622 = vsyncadd %s613, 0
          %s623 = smul.addr %s29, 16
          %s624 = sadd.s32 %s620, %s623
          %s625 = smul.addr %s624, 8
          %s626 = scalar_lea.hbm %s4, %s625
          %s627 = sshll.u32 %s616, 4
          %s628 = int_to_ptr.vmem [resolvable:$true] %s627
          %s629 = sshll.u32 %s626, 4
          %s630 = int_to_ptr.hbm [resolvable:$true] %s629
          %635 = dma.vmem_to_hbm [thread:$0]  %s628, 2048, %s630, %s613, 128, 128, 8
        $region60: #{tpu_custom_call.1} parent=35 // pred_fallthru
          _
      $region36: #{tpu_custom_call.1} parent=5 // pred_fallthru
        _
      %p636 = scmp.le.s32.totalorder 2, %s19
      // Predicated region
      $region61: #{tpu_custom_call.1} parent=5 // pred_check
        %p637 = pneg %p636
      $region62: #{tpu_custom_call.1} parent=5 // pred_check_branch
        %639 = sbr.rel (%p637) target = $region64
      $region63: #{tpu_custom_call.1} parent=5 // pred_region
        %s640 = ssub.s32 %s19, 2
        // Predicated region
        $region65: #{tpu_custom_call.1} parent=63 // pred_check
          %p641 = pneg %p169
        $region66: #{tpu_custom_call.1} parent=63 // pred_check_branch
          %643 = sbr.rel (%p641) target = $region68
        $region67: #{tpu_custom_call.1} parent=63 // pred_region
          %s644 = sand.u32 %s154, 1
          %s645 = scalar_lea.sflag [#allocation5], %s644
          %s646 = sand.u32 %s154, 1
          %s647 = smul.addr %s646, 128
          %s648 = scalar_lea.vmem [#allocation9], %s647
          %650 = dma.done %s645, 2048
        $region68: #{tpu_custom_call.1} parent=63 // pred_fallthru
          _
      $region64: #{tpu_custom_call.1} parent=5 // pred_fallthru
        _
    $region6: #{tpu_custom_call.1} parent=1 // loop_footer
      %s23 = sadd.s32 1, %s19
    $region7: #{tpu_custom_call.1} parent=1 // loop_footer_branch
      %18 = sbr.rel target = $region3
    $region8: #{tpu_custom_call.1} parent=1 // loop_exit
      _
    %651 = vsyncpa [#allocation4], 1
    %s652 = scalar_lea.sflag [#allocation4], 1
    %653 = vsyncpa %s652, 1
    %654 = vsyncpa [#allocation7], 1
    %s655 = scalar_lea.sflag [#allocation7], 1
    %656 = vsyncpa %s655, 1
    %657 = vsyncpa [#allocation5], 1
    %s658 = scalar_lea.sflag [#allocation5], 1
    %659 = vsyncpa %s658, 1

</llo_original>
